<compile_context>
chip_gen: v6e
topology: v6e:2x2x1
jax: 0.10.0
libtpu: 0.0.40
codegen_flags: <defaults>
</compile_context>

<pallas_src>
import functools

import jax
import jax.numpy as jnp
import numpy as np
from jax.experimental import pallas as pl
from jax.experimental.pallas import tpu as pltpu


def _round_up(x, m):
    return ((x + m - 1) // m) * m


def _vmem_limit_bytes():
    # 64 MiB on chips with 128 MiB physical VMEM (v5e/v6e); 32 MiB otherwise (v7x-safe).
    try:
        cap = getattr(pltpu.get_tpu_info(), "vmem_capacity_bytes", None)
        if cap is not None and cap >= 100 * 1024 * 1024:
            return 64 * 1024 * 1024
    except Exception:
        pass
    return 32 * 1024 * 1024


def _pick_row_tile(n_pad, unit, per_row_bytes, budget, cap=512):
    """Largest multiple of `unit` dividing n_pad that is <= cap and fits the byte budget."""
    m = n_pad // unit
    for f in range(m, 0, -1):
        if m % f:
            continue
        tm = f * unit
        if tm <= cap and tm * per_row_bytes <= budget:
            return tm
    return unit


# ------------------------- Kernel 1: backbone (Linear + ReLU) -------------------------

def backbone_resident_kernel(x_ref, w_ref, b_ref, f_ref):
    # bf16 MXU inputs, f32 accumulation; W stays resident (constant index_map).
    acc = jnp.dot(x_ref[...], w_ref[...], preferred_element_type=jnp.float32)
    f_ref[...] = jnp.maximum(acc + b_ref[...], 0.0).astype(f_ref.dtype)


def backbone_ktile_kernel(x_ref, w_ref, b_ref, f_ref, acc_ref):
    k = pl.program_id(1)

    @pl.when(k == 0)
    def _():
        acc_ref[...] = jnp.zeros_like(acc_ref)

    acc_ref[...] += jnp.dot(x_ref[...], w_ref[...], preferred_element_type=jnp.float32)

    @pl.when(k == pl.num_programs(1) - 1)
    def _():
        f_ref[...] = jnp.maximum(acc_ref[...] + b_ref[...], 0.0).astype(f_ref.dtype)


def backbone_forward(x_bf, w_bf, b, *, n_pad, d_pad, tm_unit, vmem_limit):
    """x_bf: (N, Din) bf16; w_bf: (Din, D) bf16; b: (1, D) f32 -> feats (n_pad, d_pad) bf16.

    Zero padding keeps the math exact: padded Din/D columns contribute 0; padded rows
    produce relu(b), masked by row validity in the loss kernel."""
    n, din = x_bf.shape
    d = w_bf.shape[1]
    k_full = _round_up(din, 128)
    w_res_bytes = 2 * k_full * d_pad * 2     # resident bf16 W, double-buffered

    if w_res_bytes <= vmem_limit // 2:
        # W resident: no K grid axis, no accumulator, no W re-streaming per row block.
        k_pad = k_full
        budget = vmem_limit - w_res_bytes - (2 << 20)
        tm = _pick_row_tile(n_pad, tm_unit, 4 * (k_pad + d_pad), budget)
        x_p = jnp.pad(x_bf, ((0, n_pad - n), (0, k_pad - din)))
        w_p = jnp.pad(w_bf, ((0, k_pad - din), (0, d_pad - d)))
        b_p = jnp.pad(b, ((0, 0), (0, d_pad - d)))
        return pl.pallas_call(
            backbone_resident_kernel,
            out_shape=jax.ShapeDtypeStruct((n_pad, d_pad), jnp.bfloat16),
            grid_spec=pltpu.PrefetchScalarGridSpec(
                num_scalar_prefetch=0,
                grid=(n_pad // tm,),
                in_specs=[
                    pl.BlockSpec((tm, k_pad), lambda i: (i, 0)),
                    pl.BlockSpec((k_pad, d_pad), lambda i: (0, 0)),
                    pl.BlockSpec((1, d_pad), lambda i: (0, 0)),
                ],
                out_specs=pl.BlockSpec((tm, d_pad), lambda i: (i, 0)),
            ),
            compiler_params=pltpu.CompilerParams(
                dimension_semantics=("parallel",),
                vmem_limit_bytes=vmem_limit),
        )(x_p, w_p, b_p)

    # Fallback for very large Din*D: K-tiled reduction (tk=1024, bf16 inputs, f32 acc).
    tk = min(1024, k_full)
    k_pad = _round_up(din, tk)
    budget = vmem_limit - 2 * tk * d_pad * 2 - (2 << 20)
    tm = _pick_row_tile(n_pad, tm_unit, 4 * tk + 8 * d_pad, budget)
    x_p = jnp.pad(x_bf, ((0, n_pad - n), (0, k_pad - din)))
    w_p = jnp.pad(w_bf, ((0, k_pad - din), (0, d_pad - d)))
    b_p = jnp.pad(b, ((0, 0), (0, d_pad - d)))
    return pl.pallas_call(
        backbone_ktile_kernel,
        out_shape=jax.ShapeDtypeStruct((n_pad, d_pad), jnp.bfloat16),
        grid_spec=pltpu.PrefetchScalarGridSpec(
            num_scalar_prefetch=0,
            grid=(n_pad // tm, k_pad // tk),
            in_specs=[
                pl.BlockSpec((tm, tk), lambda i, k: (i, k)),
                pl.BlockSpec((tk, d_pad), lambda i, k: (k, 0)),
                pl.BlockSpec((1, d_pad), lambda i, k: (0, 0)),
            ],
            out_specs=pl.BlockSpec((tm, d_pad), lambda i, k: (i, 0)),
            scratch_shapes=[pltpu.VMEM((tm, d_pad), jnp.float32)],
        ),
        compiler_params=pltpu.CompilerParams(
            dimension_semantics=("parallel", "arbitrary"),
            vmem_limit_bytes=vmem_limit),
    )(x_p, w_p, b_p)


# ------------------- Kernel 2: row-striped euclidean-dist CE + JS loss ------------------

def loss_kernel(rows_ref, cols_ref, yy_ref, out_ref, *,
                aug_num, batch, batch_pad, n_valid, temp, feat_dim, tm):
    blk = pl.program_id(0)
    f_rows = rows_ref[...]                                     # (tm, d_pad) bf16

    # ONE wide Gram against all aug_num column chunks (fills the 256-wide MXU on
    # v6e/v7x; harmless on v5e) -- the row tile is fed to the MXU once, not aug_num times.
    gram_all = jax.lax.dot_general(
        f_rows, cols_ref[...], (((1,), (1,)), ((), ())),
        preferred_element_type=jnp.float32)                    # (tm, aug_num*batch_pad)
    # -eudis with the per-row ||x_i||^2 constant dropped (cancels exactly in CE and the
    # JS softmax).  Padded columns carry yy = +1e30, so logits there are already -1e30
    # (finite sentinel -> exp underflows to exactly 0, no NaN from 0 * (-inf)).
    logits_all = 2.0 * gram_all - yy_ref[...]

    # Targets computed in-kernel (no (tm,1) DMA stream): target(row i) == i % batch.
    # i // batch via the exact float trick floor((i + 0.5) / batch) (all values << 2^22).
    row_ids = blk * tm + jax.lax.broadcasted_iota(jnp.int32, (tm, 1), 0)
    row_valid = (row_ids < n_valid).astype(jnp.float32)        # (tm, 1)
    q_i = ((row_ids.astype(jnp.float32) + 0.5) * (1.0 / batch)).astype(jnp.int32)
    tgt_col = row_ids - q_i * batch                            # == row_ids % batch
    col_ids = jax.lax.broadcasted_iota(jnp.int32, (tm, batch_pad), 1)
    tgt_mask = (col_ids == tgt_col).astype(jnp.float32)        # (tm, batch_pad)
    mask_cols = batch_pad != batch                             # static
    if mask_cols:
        col_valid_f = (col_ids < batch).astype(jnp.float32)

    inv_temp = 1.0 / float(temp)
    inv_sqrt_d = 1.0 / float(np.sqrt(feat_dim))
    q = 1.0 / float(batch)
    log2 = float(np.log(2.0))

    ce_sum = jnp.float32(0.0)
    js_sum = jnp.float32(0.0)
    for c in range(aug_num):                # static loop over lane-aligned column slices
        logits = logits_all[:, c * batch_pad:(c + 1) * batch_pad]

        # Temperature cross entropy (pad columns already at -1e30; target col is valid).
        z = logits * inv_temp
        zmax = jnp.max(z, axis=1, keepdims=True)
        lse = zmax + jnp.log(jnp.sum(jnp.exp(z - zmax), axis=1, keepdims=True))
        z_tgt = jnp.sum(tgt_mask * z, axis=1, keepdims=True)
        ce_sum += jnp.sum((lse - z_tgt) * row_valid)

        # JS-style divergence vs the uniform 1/batch.  Single full-tile exp:
        # p = e2 * 1/sum(e2) (EUP approx reciprocal); log_p reuses the same exp.
        z2 = logits * inv_sqrt_d
        z2max = jnp.max(z2, axis=1, keepdims=True)
        e2 = jnp.exp(z2 - z2max)
        sum2 = jnp.sum(e2, axis=1, keepdims=True)
        p = e2 * pl.reciprocal(sum2, approx=True)
        log_p = (z2 - z2max) - jnp.log(sum2)
        js_el = p * (log2 + log_p) - (p + q) * jnp.log(p + q)
        if mask_cols:
            js_el = js_el * col_valid_f
        js_sum += jnp.sum(jnp.sum(js_el, axis=1, keepdims=True) * row_valid)

    # Per-block partial sums: ce in sublane 0, js in sublane 1 of a lane-dense (8,128) tile.
    sub = jax.lax.broadcasted_iota(jnp.int32, (8, 128), 0)
    out_ref[0] = jnp.where(sub == 0, ce_sum, jnp.where(sub == 1, js_sum, 0.0))


def loss_forward(feats, cols_all, yy_all, *, aug_num, batch, batch_pad, n_valid,
                 temp, feat_dim, tm, vmem_limit):
    n_pad, d_pad = feats.shape
    nblk = n_pad // tm
    a_cols = aug_num * batch_pad
    kern = functools.partial(loss_kernel, aug_num=aug_num, batch=batch,
                             batch_pad=batch_pad, n_valid=n_valid, temp=temp,
                             feat_dim=feat_dim, tm=tm)
    # TODO(synk): on v7x at very large aug_num*batch*D, single-buffer the grid-invariant
    # cols block (pl.Buffered(1)) or add an aug grid axis to cut resident VMEM.
    return pl.pallas_call(
        kern,
        out_shape=jax.ShapeDtypeStruct((nblk, 8, 128), jnp.float32),
        grid_spec=pltpu.PrefetchScalarGridSpec(
            num_scalar_prefetch=0,
            grid=(nblk,),
            in_specs=[
                pl.BlockSpec((tm, d_pad), lambda i: (i, 0)),
                # Grid-invariant index maps: cols / yy are DMA'd once and stay resident.
                pl.BlockSpec((a_cols, d_pad), lambda i: (0, 0)),
                pl.BlockSpec((1, a_cols), lambda i: (0, 0)),
            ],
            out_specs=pl.BlockSpec((1, 8, 128), lambda i: (i, 0, 0)),
        ),
        compiler_params=pltpu.CompilerParams(
            dimension_semantics=("parallel",),
            vmem_limit_bytes=vmem_limit),
    )(feats, cols_all, yy_all)


# ----------------------------------- glue / wrapper ------------------------------------

def cpn_js_forward(x, w, b, *, aug_num, temp=5.0):
    """x: (batch, aug_num, C, H, W) f32.  Synthetic backbone = Linear(Din->D) + ReLU.
    Returns scalar loss (ce + js), matching the torch CPN_JS forward."""
    batch = x.shape[0]
    assert x.shape[1] == aug_num
    ch, hh, ww = x.shape[2], x.shape[3], x.shape[4]
    din = ch * hh * ww
    d = w.shape[1]
    n = aug_num * batch

    # matches torch: x.transpose(0,1).reshape(-1, C, H, W), then flatten per image.
    x_flat = jnp.transpose(x, (1, 0, 2, 3, 4)).reshape(n, din)

    d_pad = _round_up(d, 128)              # lane-dense feature dim for the MXU
    batch_pad = _round_up(batch, 128)      # lane-dense softmax/chunk axis
    # Loss row tile: <=128 (bounds live ranges / vreg pressure) and >=2 row blocks so
    # both v7x TensorCores get work.  Multiple of 16 (bf16 sublane tile).
    n_pad0 = _round_up(n, 32)
    tm_loss = min(128, n_pad0 // 2)
    n_pad = _round_up(n_pad0, tm_loss)

    vmem_limit = _vmem_limit_bytes()

    # bf16 pre-cast in the wrapper: halves x/w HBM->VMEM traffic and tile footprint.
    x_bf = x_flat.astype(jnp.bfloat16)
    w_bf = w.astype(jnp.bfloat16)

    feats = backbone_forward(x_bf, w_bf, b, n_pad=n_pad, d_pad=d_pad,
                             tm_unit=tm_loss, vmem_limit=vmem_limit)   # (n_pad,d_pad) bf16

    # Column operand for the wide Gram: (aug_num*batch_pad, d_pad) zero-padded, plus its
    # f32 squared column norms with +1e30 baked into padded columns (kills them in both
    # softmaxes with no in-kernel selects).  Tiny layout-plumbing XLA ops only.
    cols = feats[:n].reshape(aug_num, batch, d_pad)
    cols = jnp.pad(cols, ((0, 0), (0, batch_pad - batch), (0, 0)))
    cols_all = cols.reshape(aug_num * batch_pad, d_pad)
    colsq = jnp.sum(cols_all.astype(jnp.float32) ** 2, axis=-1)
    if batch_pad != batch:
        cid = jnp.arange(aug_num * batch_pad, dtype=jnp.int32) % batch_pad
        colsq = jnp.where(cid < batch, colsq, jnp.float32(1e30))
    yy_all = colsq[None, :]                                            # (1, aug*batch_pad)

    partial = loss_forward(feats, cols_all, yy_all, aug_num=aug_num, batch=batch,
                           batch_pad=batch_pad, n_valid=n, temp=temp, feat_dim=d,
                           tm=tm_loss, vmem_limit=vmem_limit)
    m_rows = aug_num * batch * aug_num
    ce = jnp.sum(partial[:, 0, 0]) / m_rows
    js = 0.5 * jnp.sum(partial[:, 1, 0]) / m_rows
    return ce + js


# ------------------------------- pure-JAX reference ------------------------------------

def reference_forward(x, w, b, *, aug_num, temp=5.0, mxu_dtype=jnp.float32):
    """Faithful CPN_JS forward in plain JAX.  mxu_dtype=bfloat16 mirrors the kernels'
    bf16-MXU-input / f32-accumulation precision choice; float32 is the original module."""
    batch = x.shape[0]
    ch, hh, ww = x.shape[2], x.shape[3], x.shape[4]
    n = aug_num * batch
    x_flat = jnp.transpose(x, (1, 0, 2, 3, 4)).reshape(n, ch * hh * ww)

    f = jnp.maximum(jnp.dot(x_flat.astype(mxu_dtype), w.astype(mxu_dtype),
                            preferred_element_type=jnp.float32) + b, 0.0)
    fm = f.astype(mxu_dtype)
    f32 = fm.astype(jnp.float32)
    xx = jnp.sum(f32 * f32, axis=1, keepdims=True)
    gram = jnp.dot(fm, fm.T, preferred_element_type=jnp.float32)
    eudis = xx - 2.0 * gram + xx.T
    logits = (-eudis).reshape(aug_num * batch * aug_num, batch)

    targets = np.tile(np.repeat(np.arange(batch), aug_num), aug_num)
    z = logits / temp
    lse = jax.scipy.special.logsumexp(z, axis=1)
    ce = jnp.mean(lse - z[np.arange(z.shape[0]), targets])

    p = jax.nn.softmax(logits / np.sqrt(w.shape[1]), axis=1)
    q = 1.0 / batch
    js = 0.5 * jnp.mean(jnp.sum(p * jnp.log(2.0 * p + 1e-12)
                                - (p + q) * jnp.log(p + q), axis=1))
    return ce + js


if __name__ == "__main__":
    batch, aug_num = 2, 2
    C, H, W = 4, 16, 16
    D = 32                      # feature dim of the synthetic backbone
    din = C * H * W

    key = jax.random.PRNGKey(0)
    kx, kw, kb = jax.random.split(key, 3)
    x = jax.random.normal(kx, (batch, aug_num, C, H, W), dtype=jnp.float32)
    w = jax.random.normal(kw, (din, D), dtype=jnp.float32) * 0.02
    b = jax.random.normal(kb, (1, D), dtype=jnp.float32) * 0.01

    loss = jax.block_until_ready(cpn_js_forward(x, w, b, aug_num=aug_num, temp=5.0))

    # Tight check vs a reference that mirrors the kernels' bf16-MXU precision.
    ref_bf16 = jax.block_until_ready(
        reference_forward(x, w, b, aug_num=aug_num, temp=5.0, mxu_dtype=jnp.bfloat16))
    np.testing.assert_allclose(np.asarray(loss), np.asarray(ref_bf16), rtol=3e-3, atol=3e-3)

    # Looser sanity check vs the pure-f32 original-module semantics (bf16 MXU inputs only).
    ref_f32 = jax.block_until_ready(
        reference_forward(x, w, b, aug_num=aug_num, temp=5.0, mxu_dtype=jnp.float32))
    np.testing.assert_allclose(np.asarray(loss), np.asarray(ref_f32), rtol=2e-2, atol=2e-2)

    print("KERNEL_OK")
</pallas_src>

<mosaic_0001>
module attributes {stable_mosaic.version = 11 : i64} {
  func.func @backbone_resident_kernel(%arg0: i32, %arg1: memref<32x1024xbf16, #tpu.memory_space<vmem>>, %arg2: memref<1024x128xbf16, #tpu.memory_space<vmem>>, %arg3: memref<1x128xf32, #tpu.memory_space<vmem>>, %arg4: memref<32x128xbf16, #tpu.memory_space<vmem>>) attributes {dimension_semantics = [#tpu.dimension_semantics<parallel>], iteration_bounds = array<i64: 1>, scalar_prefetch = 0 : i64, scratch_operands = 0 : i64, tpu.core_type = #tpu.core_type<tc>, window_params = [{transform_indices = @transform_0, window_bounds = array<i64: 32, 1024>}, {pipeline_mode = #tpu.pipeline_mode<synchronous>, transform_indices = @transform_1, window_bounds = array<i64: 1024, 128>}, {pipeline_mode = #tpu.pipeline_mode<synchronous>, transform_indices = @transform_2, window_bounds = array<i64: 1, 128>}, {transform_indices = @transform_3, window_bounds = array<i64: 32, 128>}]} {
    %c0 = arith.constant 0 : index
    %c0_0 = arith.constant 0 : index
    %0 = vector.load %arg1[%c0, %c0_0] : memref<32x1024xbf16, #tpu.memory_space<vmem>>, vector<32x1024xbf16>
    %c0_1 = arith.constant 0 : index
    %c0_2 = arith.constant 0 : index
    %1 = vector.load %arg2[%c0_1, %c0_2] : memref<1024x128xbf16, #tpu.memory_space<vmem>>, vector<1024x128xbf16>
    %cst = arith.constant dense<0.000000e+00> : vector<32x128xf32>
    %2 = tpu.matmul %0, %1, %cst {dimension_numbers = #tpu.dot_dimension_numbers<[1], [0], [0], [1], [0, 0, 1, 1], [], []>} : vector<32x1024xbf16>, vector<1024x128xbf16>, vector<32x128xf32> -> vector<32x128xf32>
    %c0_3 = arith.constant 0 : index
    %c0_4 = arith.constant 0 : index
    %3 = vector.load %arg3[%c0_3, %c0_4] : memref<1x128xf32, #tpu.memory_space<vmem>>, vector<1x128xf32>
    %4 = vector.broadcast %3 : vector<1x128xf32> to vector<32x128xf32>
    %5 = arith.addf %2, %4 : vector<32x128xf32>
    %cst_5 = arith.constant 0.000000e+00 : f32
    %6 = vector.broadcast %cst_5 : f32 to vector<32x128xf32>
    %7 = arith.maximumf %5, %6 : vector<32x128xf32>
    %8 = arith.truncf %7 : vector<32x128xf32> to vector<32x128xbf16>
    %c0_6 = arith.constant 0 : index
    %c0_7 = arith.constant 0 : index
    %9 = vector.load %arg4[%c0_6, %c0_7] : memref<32x128xbf16, #tpu.memory_space<vmem>>, vector<32x128xbf16>
    tpu.vector_store %arg4[%c0_6, %c0_7], %8 {strides = array<i32>} : memref<32x128xbf16, #tpu.memory_space<vmem>>, vector<32x128xbf16>,
    return
  }
  func.func @transform_0(%arg0: i32) -> (i32, i32) {
    %c0_i32 = arith.constant 0 : i32
    %c0_i32_0 = arith.constant 0 : i32
    return %arg0, %c0_i32 : i32, i32
  }
  func.func @transform_1(%arg0: i32) -> (i32, i32) {
    %c0_i32 = arith.constant 0 : i32
    %c0_i32_0 = arith.constant 0 : i32
    %c0_i32_1 = arith.constant 0 : i32
    return %c0_i32, %c0_i32_0 : i32, i32
  }
  func.func @transform_2(%arg0: i32) -> (i32, i32) {
    %c0_i32 = arith.constant 0 : i32
    %c0_i32_0 = arith.constant 0 : i32
    %c0_i32_1 = arith.constant 0 : i32
    return %c0_i32, %c0_i32_0 : i32, i32
  }
  func.func @transform_3(%arg0: i32) -> (i32, i32) {
    %c0_i32 = arith.constant 0 : i32
    %c0_i32_0 = arith.constant 0 : i32
    return %arg0, %c0_i32 : i32, i32
  }
}

</mosaic_0001>

<llo_original>
// kernel: tpu_custom_call.1
$region0: #{tpu_custom_call.1}
  #allocation0 [shape = 'u32[]', space=smem, size = 0x4, offset = 0x4, fixed_abs, tag = 'smem constant byte address 0x4 - core index']
  #allocation1 [shape = 'u32[144,128]{1,0:T(1,128)}', space=vmem, size = 0x12000, scoped, tag = 'internal scratch']
  %s0 = inlined_call_operand.hbm [shape: bf16[32,1024], index: 0, kind: input, shape index: {}]
  %s1 = inlined_call_operand.hbm [shape: bf16[1024,128], index: 1, kind: input, shape index: {}]
  %s2 = inlined_call_operand.vmem [shape: f32[1,128], index: 2, kind: input, shape index: {}]
  %s3 = inlined_call_operand.hbm [shape: bf16[32,128], index: 3, kind: output, shape index: {}]
  %s4 = sld [smem:[#allocation0]]
  $region30: #{tpu_custom_call.1} parent=0
    _
  %s6 = ssub.s32 1, %s4
  %s7 = scalar_select 0, %s6, %s4
  $region1: #{tpu_custom_call.1} parent=0
    #allocation2 [shape = 'u8[65536]{0}', space=vmem, size = 0x10000, scoped, tag = 'input window, operand 0, single buffered']
    #allocation3 [shape = 's32[1]{0}', space=sflag, size = 0x4, scoped, tag = 'scoped memory for tpu_custom_call.1']
    #allocation4 [shape = 's32[1]{0}', space=sflag, size = 0x4, scoped, tag = 'scoped memory for tpu_custom_call.1']
    #allocation5 [shape = 'u8[262144]{0}', space=vmem, size = 0x40000, scoped, tag = 'input window, operand 1, single buffered']
    #allocation6 [shape = 's32[1]{0}', space=sflag, size = 0x4, scoped, tag = 'scoped memory for tpu_custom_call.1']
    #allocation7 [shape = 'u8[8192]{0}', space=vmem, size = 0x2000, scoped, tag = 'output window, operand 0, single buffered']
    %8 = vsyncpa [#allocation3], 0
    %9 = vsyncpa [#allocation6], 0
    %10 = vsyncpa [#allocation4], 0
    // Predicated region
    $region2: #{tpu_custom_call.1} parent=1 // pred_check
      _
    $region3: #{tpu_custom_call.1} parent=1 // pred_check_branch
      %12 = sbr.rel (0) target = $region5
    $region4: #{tpu_custom_call.1} parent=1 // pred_region
      %s14 = ssub.s32 2048, 2048
      %15 = vsyncadd [#allocation3], %s14
      %s16 = sshll.u32 [#allocation2], 4
      %s17 = int_to_ptr.vmem [resolvable:$true] %s16
      %22 = dma.hbm_to_vmem [thread:$0]  %s0, 2048, %s17, [#allocation3], 512, 512, 32
    $region5: #{tpu_custom_call.1} parent=1 // pred_fallthru
      _
    // Predicated region
    $region6: #{tpu_custom_call.1} parent=1 // pred_check
      _
    $region7: #{tpu_custom_call.1} parent=1 // pred_check_branch
      %24 = sbr.rel (0) target = $region9
    $region8: #{tpu_custom_call.1} parent=1 // pred_region
      %s26 = ssub.s32 8192, 8192
      %27 = vsyncadd [#allocation6], %s26
      %s28 = sshll.u32 [#allocation5], 4
      %s29 = int_to_ptr.vmem [resolvable:$true] %s28
      %34 = dma.hbm_to_vmem [thread:$0]  %s1, 8192, %s29, [#allocation6], 64, 64, 4
    $region9: #{tpu_custom_call.1} parent=1 // pred_fallthru
      _
    // Predicated region
    $region10: #{tpu_custom_call.1} parent=1 // pred_check
      _
    $region11: #{tpu_custom_call.1} parent=1 // pred_check_branch
      %36 = sbr.rel (0) target = $region13
    $region12: #{tpu_custom_call.1} parent=1 // pred_region
      _
    $region13: #{tpu_custom_call.1} parent=1 // pred_fallthru
      _
    // Predicated region
    $region14: #{tpu_custom_call.1} parent=1 // pred_check
      _
    $region15: #{tpu_custom_call.1} parent=1 // pred_check_branch
      %38 = sbr.rel (0) target = $region17
    $region16: #{tpu_custom_call.1} parent=1 // pred_region
      %39 = dma.done [#allocation3], 2048
    $region17: #{tpu_custom_call.1} parent=1 // pred_fallthru
      _
    // Predicated region
    $region18: #{tpu_custom_call.1} parent=1 // pred_check
      _
    $region19: #{tpu_custom_call.1} parent=1 // pred_check_branch
      %41 = sbr.rel (0) target = $region21
    $region20: #{tpu_custom_call.1} parent=1 // pred_region
      %42 = dma.done [#allocation6], 8192
    $region21: #{tpu_custom_call.1} parent=1 // pred_fallthru
      _
    %v44 = vld [vmem:[#allocation2] sm:$0xff]
    %v45 = vld [vmem:[#allocation2 + $0x8] sm:$0xff]
    %v46 = vld [vmem:[#allocation2 + $0x10] sm:$0xff]
    %v47 = vld [vmem:[#allocation2 + $0x18] sm:$0xff]
    %v48 = vld [vmem:[#allocation2 + $0x20] sm:$0xff]
    %v49 = vld [vmem:[#allocation2 + $0x28] sm:$0xff]
    %v50 = vld [vmem:[#allocation2 + $0x30] sm:$0xff]
    %v51 = vld [vmem:[#allocation2 + $0x38] sm:$0xff]
    %v52 = vld [vmem:[#allocation2 + $0x40] sm:$0xff]
    %v53 = vld [vmem:[#allocation2 + $0x48] sm:$0xff]
    %v54 = vld [vmem:[#allocation2 + $0x50] sm:$0xff]
    %v55 = vld [vmem:[#allocation2 + $0x58] sm:$0xff]
    %v56 = vld [vmem:[#allocation2 + $0x60] sm:$0xff]
    %v57 = vld [vmem:[#allocation2 + $0x68] sm:$0xff]
    %v58 = vld [vmem:[#allocation2 + $0x70] sm:$0xff]
    %v59 = vld [vmem:[#allocation2 + $0x78] sm:$0xff]
    %v60 = vld [vmem:[#allocation5] sm:$0xf]
    %v61 = vld [vmem:[#allocation5 + $0x4] sm:$0xf]
    %v62 = vld [vmem:[#allocation5 + $0x8] sm:$0xf]
    %v63 = vld [vmem:[#allocation5 + $0xc] sm:$0xf]
    %v64 = vld [vmem:[#allocation5 + $0x10] sm:$0xf]
    %v65 = vld [vmem:[#allocation5 + $0x14] sm:$0xf]
    %v66 = vld [vmem:[#allocation5 + $0x18] sm:$0xf]
    %v67 = vld [vmem:[#allocation5 + $0x1c] sm:$0xf]
    %v68 = vld [vmem:[#allocation5 + $0x20] sm:$0xf]
    %v69 = vld [vmem:[#allocation5 + $0x24] sm:$0xf]
    %v70 = vld [vmem:[#allocation5 + $0x28] sm:$0xf]
    %v71 = vld [vmem:[#allocation5 + $0x2c] sm:$0xf]
    %v72 = vld [vmem:[#allocation5 + $0x30] sm:$0xf]
    %v73 = vld [vmem:[#allocation5 + $0x34] sm:$0xf]
    %v74 = vld [vmem:[#allocation5 + $0x38] sm:$0xf]
    %v75 = vld [vmem:[#allocation5 + $0x3c] sm:$0xf]
    %v76 = vld [vmem:[#allocation5 + $0x40] sm:$0xf]
    %v77 = vld [vmem:[#allocation5 + $0x44] sm:$0xf]
    %v78 = vld [vmem:[#allocation5 + $0x48] sm:$0xf]
    %v79 = vld [vmem:[#allocation5 + $0x4c] sm:$0xf]
    %v80 = vld [vmem:[#allocation5 + $0x50] sm:$0xf]
    %v81 = vld [vmem:[#allocation5 + $0x54] sm:$0xf]
    %v82 = vld [vmem:[#allocation5 + $0x58] sm:$0xf]
    %v83 = vld [vmem:[#allocation5 + $0x5c] sm:$0xf]
    %v84 = vld [vmem:[#allocation5 + $0x60] sm:$0xf]
    %v85 = vld [vmem:[#allocation5 + $0x64] sm:$0xf]
    %v86 = vld [vmem:[#allocation5 + $0x68] sm:$0xf]
    %v87 = vld [vmem:[#allocation5 + $0x6c] sm:$0xf]
    %v88 = vld [vmem:[#allocation5 + $0x70] sm:$0xf]
    %v89 = vld [vmem:[#allocation5 + $0x74] sm:$0xf]
    %v90 = vld [vmem:[#allocation5 + $0x78] sm:$0xf]
    %v91 = vld [vmem:[#allocation5 + $0x7c] sm:$0xf]
    %v92 = vld [vmem:[#allocation5 + $0x80] sm:$0xf]
    %v93 = vld [vmem:[#allocation5 + $0x84] sm:$0xf]
    %v94 = vld [vmem:[#allocation5 + $0x88] sm:$0xf]
    %v95 = vld [vmem:[#allocation5 + $0x8c] sm:$0xf]
    %v96 = vld [vmem:[#allocation5 + $0x90] sm:$0xf]
    %v97 = vld [vmem:[#allocation5 + $0x94] sm:$0xf]
    %v98 = vld [vmem:[#allocation5 + $0x98] sm:$0xf]
    %v99 = vld [vmem:[#allocation5 + $0x9c] sm:$0xf]
    %v100 = vld [vmem:[#allocation5 + $0xa0] sm:$0xf]
    %v101 = vld [vmem:[#allocation5 + $0xa4] sm:$0xf]
    %v102 = vld [vmem:[#allocation5 + $0xa8] sm:$0xf]
    %v103 = vld [vmem:[#allocation5 + $0xac] sm:$0xf]
    %v104 = vld [vmem:[#allocation5 + $0xb0] sm:$0xf]
    %v105 = vld [vmem:[#allocation5 + $0xb4] sm:$0xf]
    %v106 = vld [vmem:[#allocation5 + $0xb8] sm:$0xf]
    %v107 = vld [vmem:[#allocation5 + $0xbc] sm:$0xf]
    %v108 = vld [vmem:[#allocation5 + $0xc0] sm:$0xf]
    %v109 = vld [vmem:[#allocation5 + $0xc4] sm:$0xf]
    %v110 = vld [vmem:[#allocation5 + $0xc8] sm:$0xf]
    %v111 = vld [vmem:[#allocation5 + $0xcc] sm:$0xf]
    %v112 = vld [vmem:[#allocation5 + $0xd0] sm:$0xf]
    %v113 = vld [vmem:[#allocation5 + $0xd4] sm:$0xf]
    %v114 = vld [vmem:[#allocation5 + $0xd8] sm:$0xf]
    %v115 = vld [vmem:[#allocation5 + $0xdc] sm:$0xf]
    %v116 = vld [vmem:[#allocation5 + $0xe0] sm:$0xf]
    %v117 = vld [vmem:[#allocation5 + $0xe4] sm:$0xf]
    %v118 = vld [vmem:[#allocation5 + $0xe8] sm:$0xf]
    %v119 = vld [vmem:[#allocation5 + $0xec] sm:$0xf]
    %v120 = vld [vmem:[#allocation5 + $0xf0] sm:$0xf]
    %v121 = vld [vmem:[#allocation5 + $0xf4] sm:$0xf]
    %v122 = vld [vmem:[#allocation5 + $0xf8] sm:$0xf]
    %v123 = vld [vmem:[#allocation5 + $0xfc] sm:$0xf]
    %v124 = vld [vmem:[#allocation5 + $0x100] sm:$0xf]
    %v125 = vld [vmem:[#allocation5 + $0x104] sm:$0xf]
    %v126 = vld [vmem:[#allocation5 + $0x108] sm:$0xf]
    %v127 = vld [vmem:[#allocation5 + $0x10c] sm:$0xf]
    %v128 = vld [vmem:[#allocation5 + $0x110] sm:$0xf]
    %v129 = vld [vmem:[#allocation5 + $0x114] sm:$0xf]
    %v130 = vld [vmem:[#allocation5 + $0x118] sm:$0xf]
    %v131 = vld [vmem:[#allocation5 + $0x11c] sm:$0xf]
    %v132 = vld [vmem:[#allocation5 + $0x120] sm:$0xf]
    %v133 = vld [vmem:[#allocation5 + $0x124] sm:$0xf]
    %v134 = vld [vmem:[#allocation5 + $0x128] sm:$0xf]
    %v135 = vld [vmem:[#allocation5 + $0x12c] sm:$0xf]
    %v136 = vld [vmem:[#allocation5 + $0x130] sm:$0xf]
    %v137 = vld [vmem:[#allocation5 + $0x134] sm:$0xf]
    %v138 = vld [vmem:[#allocation5 + $0x138] sm:$0xf]
    %v139 = vld [vmem:[#allocation5 + $0x13c] sm:$0xf]
    %v140 = vld [vmem:[#allocation5 + $0x140] sm:$0xf]
    %v141 = vld [vmem:[#allocation5 + $0x144] sm:$0xf]
    %v142 = vld [vmem:[#allocation5 + $0x148] sm:$0xf]
    %v143 = vld [vmem:[#allocation5 + $0x14c] sm:$0xf]
    %v144 = vld [vmem:[#allocation5 + $0x150] sm:$0xf]
    %v145 = vld [vmem:[#allocation5 + $0x154] sm:$0xf]
    %v146 = vld [vmem:[#allocation5 + $0x158] sm:$0xf]
    %v147 = vld [vmem:[#allocation5 + $0x15c] sm:$0xf]
    %v148 = vld [vmem:[#allocation5 + $0x160] sm:$0xf]
    %v149 = vld [vmem:[#allocation5 + $0x164] sm:$0xf]
    %v150 = vld [vmem:[#allocation5 + $0x168] sm:$0xf]
    %v151 = vld [vmem:[#allocation5 + $0x16c] sm:$0xf]
    %v152 = vld [vmem:[#allocation5 + $0x170] sm:$0xf]
    %v153 = vld [vmem:[#allocation5 + $0x174] sm:$0xf]
    %v154 = vld [vmem:[#allocation5 + $0x178] sm:$0xf]
    %v155 = vld [vmem:[#allocation5 + $0x17c] sm:$0xf]
    %v156 = vld [vmem:[#allocation5 + $0x180] sm:$0xf]
    %v157 = vld [vmem:[#allocation5 + $0x184] sm:$0xf]
    %v158 = vld [vmem:[#allocation5 + $0x188] sm:$0xf]
    %v159 = vld [vmem:[#allocation5 + $0x18c] sm:$0xf]
    %v160 = vld [vmem:[#allocation5 + $0x190] sm:$0xf]
    %v161 = vld [vmem:[#allocation5 + $0x194] sm:$0xf]
    %v162 = vld [vmem:[#allocation5 + $0x198] sm:$0xf]
    %v163 = vld [vmem:[#allocation5 + $0x19c] sm:$0xf]
    %v164 = vld [vmem:[#allocation5 + $0x1a0] sm:$0xf]
    %v165 = vld [vmem:[#allocation5 + $0x1a4] sm:$0xf]
    %v166 = vld [vmem:[#allocation5 + $0x1a8] sm:$0xf]
    %v167 = vld [vmem:[#allocation5 + $0x1ac] sm:$0xf]
    %v168 = vld [vmem:[#allocation5 + $0x1b0] sm:$0xf]
    %v169 = vld [vmem:[#allocation5 + $0x1b4] sm:$0xf]
    %v170 = vld [vmem:[#allocation5 + $0x1b8] sm:$0xf]
    %v171 = vld [vmem:[#allocation5 + $0x1bc] sm:$0xf]
    %v172 = vld [vmem:[#allocation5 + $0x1c0] sm:$0xf]
    %v173 = vld [vmem:[#allocation5 + $0x1c4] sm:$0xf]
    %v174 = vld [vmem:[#allocation5 + $0x1c8] sm:$0xf]
    %v175 = vld [vmem:[#allocation5 + $0x1cc] sm:$0xf]
    %v176 = vld [vmem:[#allocation5 + $0x1d0] sm:$0xf]
    %v177 = vld [vmem:[#allocation5 + $0x1d4] sm:$0xf]
    %v178 = vld [vmem:[#allocation5 + $0x1d8] sm:$0xf]
    %v179 = vld [vmem:[#allocation5 + $0x1dc] sm:$0xf]
    %v180 = vld [vmem:[#allocation5 + $0x1e0] sm:$0xf]
    %v181 = vld [vmem:[#allocation5 + $0x1e4] sm:$0xf]
    %v182 = vld [vmem:[#allocation5 + $0x1e8] sm:$0xf]
    %v183 = vld [vmem:[#allocation5 + $0x1ec] sm:$0xf]
    %v184 = vld [vmem:[#allocation5 + $0x1f0] sm:$0xf]
    %v185 = vld [vmem:[#allocation5 + $0x1f4] sm:$0xf]
    %v186 = vld [vmem:[#allocation5 + $0x1f8] sm:$0xf]
    %v187 = vld [vmem:[#allocation5 + $0x1fc] sm:$0xf]
    %v188 = vld [vmem:[%s2] sm:$0x1]
    %v190 = vlaneseq
    %v191 = vshrl.u32 %v190, 7
    %v192 = vsub.s32 0, %v191
    %v193 = vrot.slane %v188, %v192
    %v211 = vunpack.c.l.b16 %v44
    %v212 = vunpack.c.h.b16 %v44
    %v213 = vunpack.c.l.b16 %v45
    %v214 = vunpack.c.h.b16 %v45
    %v215 = vunpack.c.l.b16 %v46
    %v216 = vunpack.c.h.b16 %v46
    %v217 = vunpack.c.l.b16 %v47
    %v218 = vunpack.c.h.b16 %v47
    %v219 = vunpack.c.l.b16 %v48
    %v220 = vunpack.c.h.b16 %v48
    %v221 = vunpack.c.l.b16 %v49
    %v222 = vunpack.c.h.b16 %v49
    %v223 = vunpack.c.l.b16 %v50
    %v224 = vunpack.c.h.b16 %v50
    %v225 = vunpack.c.l.b16 %v51
    %v226 = vunpack.c.h.b16 %v51
    %v227 = vunpack.c.l.b16 %v52
    %v228 = vunpack.c.h.b16 %v52
    %v229 = vunpack.c.l.b16 %v53
    %v230 = vunpack.c.h.b16 %v53
    %v231 = vunpack.c.l.b16 %v54
    %v232 = vunpack.c.h.b16 %v54
    %v233 = vunpack.c.l.b16 %v55
    %v234 = vunpack.c.h.b16 %v55
    %v235 = vunpack.c.l.b16 %v56
    %v236 = vunpack.c.h.b16 %v56
    %v237 = vunpack.c.l.b16 %v57
    %v238 = vunpack.c.h.b16 %v57
    %v239 = vunpack.c.l.b16 %v58
    %v240 = vunpack.c.h.b16 %v58
    %v241 = vunpack.c.l.b16 %v59
    %v242 = vunpack.c.h.b16 %v59
    %v243 = vpack.c.b16 %v219, %v211
    %v244 = vpack.c.b16 %v220, %v212
    %v245 = vpack.c.b16 %v221, %v213
    %v246 = vpack.c.b16 %v222, %v214
    %v247 = vpack.c.b16 %v223, %v215
    %v248 = vpack.c.b16 %v224, %v216
    %v249 = vpack.c.b16 %v225, %v217
    %v250 = vpack.c.b16 %v226, %v218
    %v251 = vpack.c.b16 %v235, %v227
    %v252 = vpack.c.b16 %v236, %v228
    %v253 = vpack.c.b16 %v237, %v229
    %v254 = vpack.c.b16 %v238, %v230
    %v255 = vpack.c.b16 %v239, %v231
    %v256 = vpack.c.b16 %v240, %v232
    %v257 = vpack.c.b16 %v241, %v233
    %v258 = vpack.c.b16 %v242, %v234
    %v403 = vunpack.c.l.b16 %v60
    %v404 = vunpack.c.l.b16 %v61
    %v405 = vunpack.c.l.b16 %v62
    %v406 = vunpack.c.l.b16 %v63
    %v407 = vunpack.c.l.b16 %v64
    %v408 = vunpack.c.l.b16 %v65
    %v409 = vunpack.c.l.b16 %v66
    %v410 = vunpack.c.l.b16 %v67
    %v411 = vunpack.c.l.b16 %v68
    %v412 = vunpack.c.l.b16 %v69
    %v413 = vunpack.c.l.b16 %v70
    %v414 = vunpack.c.l.b16 %v71
    %v415 = vunpack.c.l.b16 %v72
    %v416 = vunpack.c.l.b16 %v73
    %v417 = vunpack.c.l.b16 %v74
    %v418 = vunpack.c.l.b16 %v75
    %v419 = vunpack.c.l.b16 %v76
    %v420 = vunpack.c.l.b16 %v77
    %v421 = vunpack.c.l.b16 %v78
    %v422 = vunpack.c.l.b16 %v79
    %v423 = vunpack.c.l.b16 %v80
    %v424 = vunpack.c.l.b16 %v81
    %v425 = vunpack.c.l.b16 %v82
    %v426 = vunpack.c.l.b16 %v83
    %v427 = vunpack.c.l.b16 %v84
    %v428 = vunpack.c.l.b16 %v85
    %v429 = vunpack.c.l.b16 %v86
    %v430 = vunpack.c.l.b16 %v87
    %v431 = vunpack.c.l.b16 %v88
    %v432 = vunpack.c.l.b16 %v89
    %v433 = vunpack.c.l.b16 %v90
    %v434 = vunpack.c.l.b16 %v91
    %v435 = vunpack.c.l.b16 %v92
    %v436 = vunpack.c.l.b16 %v93
    %v437 = vunpack.c.l.b16 %v94
    %v438 = vunpack.c.l.b16 %v95
    %v439 = vunpack.c.l.b16 %v96
    %v440 = vunpack.c.l.b16 %v97
    %v441 = vunpack.c.l.b16 %v98
    %v442 = vunpack.c.l.b16 %v99
    %v443 = vunpack.c.l.b16 %v100
    %v444 = vunpack.c.l.b16 %v101
    %v445 = vunpack.c.l.b16 %v102
    %v446 = vunpack.c.l.b16 %v103
    %v447 = vunpack.c.l.b16 %v104
    %v448 = vunpack.c.l.b16 %v105
    %v449 = vunpack.c.l.b16 %v106
    %v450 = vunpack.c.l.b16 %v107
    %v451 = vunpack.c.l.b16 %v108
    %v452 = vunpack.c.l.b16 %v109
    %v453 = vunpack.c.l.b16 %v110
    %v454 = vunpack.c.l.b16 %v111
    %v455 = vunpack.c.l.b16 %v112
    %v456 = vunpack.c.l.b16 %v113
    %v457 = vunpack.c.l.b16 %v114
    %v458 = vunpack.c.l.b16 %v115
    %v459 = vunpack.c.l.b16 %v116
    %v460 = vunpack.c.l.b16 %v117
    %v461 = vunpack.c.l.b16 %v118
    %v462 = vunpack.c.l.b16 %v119
    %v463 = vunpack.c.l.b16 %v120
    %v464 = vunpack.c.l.b16 %v121
    %v465 = vunpack.c.l.b16 %v122
    %v466 = vunpack.c.l.b16 %v123
    %v467 = vunpack.c.l.b16 %v124
    %v468 = vunpack.c.l.b16 %v125
    %v469 = vunpack.c.l.b16 %v126
    %v470 = vunpack.c.l.b16 %v127
    %v471 = vunpack.c.l.b16 %v128
    %v472 = vunpack.c.l.b16 %v129
    %v473 = vunpack.c.l.b16 %v130
    %v474 = vunpack.c.l.b16 %v131
    %v475 = vunpack.c.l.b16 %v132
    %v476 = vunpack.c.l.b16 %v133
    %v477 = vunpack.c.l.b16 %v134
    %v478 = vunpack.c.l.b16 %v135
    %v479 = vunpack.c.l.b16 %v136
    %v480 = vunpack.c.l.b16 %v137
    %v481 = vunpack.c.l.b16 %v138
    %v482 = vunpack.c.l.b16 %v139
    %v483 = vunpack.c.l.b16 %v140
    %v484 = vunpack.c.l.b16 %v141
    %v485 = vunpack.c.l.b16 %v142
    %v486 = vunpack.c.l.b16 %v143
    %v487 = vunpack.c.l.b16 %v144
    %v488 = vunpack.c.l.b16 %v145
    %v489 = vunpack.c.l.b16 %v146
    %v490 = vunpack.c.l.b16 %v147
    %v491 = vunpack.c.l.b16 %v148
    %v492 = vunpack.c.l.b16 %v149
    %v493 = vunpack.c.l.b16 %v150
    %v494 = vunpack.c.l.b16 %v151
    %v495 = vunpack.c.l.b16 %v152
    %v496 = vunpack.c.l.b16 %v153
    %v497 = vunpack.c.l.b16 %v154
    %v498 = vunpack.c.l.b16 %v155
    %v499 = vunpack.c.l.b16 %v156
    %v500 = vunpack.c.l.b16 %v157
    %v501 = vunpack.c.l.b16 %v158
    %v502 = vunpack.c.l.b16 %v159
    %v503 = vunpack.c.l.b16 %v160
    %v504 = vunpack.c.l.b16 %v161
    %v505 = vunpack.c.l.b16 %v162
    %v506 = vunpack.c.l.b16 %v163
    %v507 = vunpack.c.l.b16 %v164
    %v508 = vunpack.c.l.b16 %v165
    %v509 = vunpack.c.l.b16 %v166
    %v510 = vunpack.c.l.b16 %v167
    %v511 = vunpack.c.l.b16 %v168
    %v512 = vunpack.c.l.b16 %v169
    %v513 = vunpack.c.l.b16 %v170
    %v514 = vunpack.c.l.b16 %v171
    %v515 = vunpack.c.l.b16 %v172
    %v516 = vunpack.c.l.b16 %v173
    %v517 = vunpack.c.l.b16 %v174
    %v518 = vunpack.c.l.b16 %v175
    %v519 = vunpack.c.l.b16 %v176
    %v520 = vunpack.c.l.b16 %v177
    %v521 = vunpack.c.l.b16 %v178
    %v522 = vunpack.c.l.b16 %v179
    %v523 = vunpack.c.l.b16 %v180
    %v524 = vunpack.c.l.b16 %v181
    %v525 = vunpack.c.l.b16 %v182
    %v526 = vunpack.c.l.b16 %v183
    %v527 = vunpack.c.l.b16 %v184
    %v528 = vunpack.c.l.b16 %v185
    %v529 = vunpack.c.l.b16 %v186
    %v530 = vunpack.c.l.b16 %v187
    %v531 = vpack.c.b16 %v404, %v403
    %v532 = vpack.c.b16 %v406, %v405
    %v533 = vpack.c.b16 %v408, %v407
    %v534 = vpack.c.b16 %v410, %v409
    %v535 = vpack.c.b16 %v412, %v411
    %v536 = vpack.c.b16 %v414, %v413
    %v537 = vpack.c.b16 %v416, %v415
    %v538 = vpack.c.b16 %v418, %v417
    %v539 = vpack.c.b16 %v420, %v419
    %v540 = vpack.c.b16 %v422, %v421
    %v541 = vpack.c.b16 %v424, %v423
    %v542 = vpack.c.b16 %v426, %v425
    %v543 = vpack.c.b16 %v428, %v427
    %v544 = vpack.c.b16 %v430, %v429
    %v545 = vpack.c.b16 %v432, %v431
    %v546 = vpack.c.b16 %v434, %v433
    %v547 = vpack.c.b16 %v436, %v435
    %v548 = vpack.c.b16 %v438, %v437
    %v549 = vpack.c.b16 %v440, %v439
    %v550 = vpack.c.b16 %v442, %v441
    %v551 = vpack.c.b16 %v444, %v443
    %v552 = vpack.c.b16 %v446, %v445
    %v553 = vpack.c.b16 %v448, %v447
    %v554 = vpack.c.b16 %v450, %v449
    %v555 = vpack.c.b16 %v452, %v451
    %v556 = vpack.c.b16 %v454, %v453
    %v557 = vpack.c.b16 %v456, %v455
    %v558 = vpack.c.b16 %v458, %v457
    %v559 = vpack.c.b16 %v460, %v459
    %v560 = vpack.c.b16 %v462, %v461
    %v561 = vpack.c.b16 %v464, %v463
    %v562 = vpack.c.b16 %v466, %v465
    %v563 = vpack.c.b16 %v468, %v467
    %v564 = vpack.c.b16 %v470, %v469
    %v565 = vpack.c.b16 %v472, %v471
    %v566 = vpack.c.b16 %v474, %v473
    %v567 = vpack.c.b16 %v476, %v475
    %v568 = vpack.c.b16 %v478, %v477
    %v569 = vpack.c.b16 %v480, %v479
    %v570 = vpack.c.b16 %v482, %v481
    %v571 = vpack.c.b16 %v484, %v483
    %v572 = vpack.c.b16 %v486, %v485
    %v573 = vpack.c.b16 %v488, %v487
    %v574 = vpack.c.b16 %v490, %v489
    %v575 = vpack.c.b16 %v492, %v491
    %v576 = vpack.c.b16 %v494, %v493
    %v577 = vpack.c.b16 %v496, %v495
    %v578 = vpack.c.b16 %v498, %v497
    %v579 = vpack.c.b16 %v500, %v499
    %v580 = vpack.c.b16 %v502, %v501
    %v581 = vpack.c.b16 %v504, %v503
    %v582 = vpack.c.b16 %v506, %v505
    %v583 = vpack.c.b16 %v508, %v507
    %v584 = vpack.c.b16 %v510, %v509
    %v585 = vpack.c.b16 %v512, %v511
    %v586 = vpack.c.b16 %v514, %v513
    %v587 = vpack.c.b16 %v516, %v515
    %v588 = vpack.c.b16 %v518, %v517
    %v589 = vpack.c.b16 %v520, %v519
    %v590 = vpack.c.b16 %v522, %v521
    %v591 = vpack.c.b16 %v524, %v523
    %v592 = vpack.c.b16 %v526, %v525
    %v593 = vpack.c.b16 %v528, %v527
    %v594 = vpack.c.b16 %v530, %v529
    %659 = vmatprep.subr.bf16.mxu0 0
    %660 = vmatpush1.bf16.msra.mxu0 %v538
    %661 = vmatprep.subr.bf16.mxu0 0
    %662 = vmatpush1.bf16.msra.mxu0 %v537
    %663 = vmatprep.subr.bf16.mxu0 0
    %664 = vmatpush1.bf16.msra.mxu0 %v536
    %665 = vmatprep.subr.bf16.mxu0 0
    %666 = vmatpush1.bf16.msra.mxu0 %v535
    %667 = vmatprep.subr.bf16.mxu0 0
    %668 = vmatpush1.bf16.msra.mxu0 %v534
    %669 = vmatprep.subr.bf16.mxu0 0
    %670 = vmatpush1.bf16.msra.mxu0 %v533
    %671 = vmatprep.subr.bf16.mxu0 0
    %672 = vmatpush1.bf16.msra.mxu0 %v532
    %673 = vmatprep.subr.bf16.mxu0 0
    %674 = vmatpush1.bf16.msra.mxu0 %v531
    %675 = vmatprep.subr.bf16.mxu0 0
    %676 = vmatpush2.bf16.msra.mxu0 %v546
    %677 = vmatprep.subr.bf16.mxu0 0
    %678 = vmatpush2.bf16.msra.mxu0 %v545
    %679 = vmatprep.subr.bf16.mxu0 0
    %680 = vmatpush2.bf16.msra.mxu0 %v544
    %681 = vmatprep.subr.bf16.mxu0 0
    %682 = vmatpush2.bf16.msra.mxu0 %v543
    %683 = vmatprep.subr.bf16.mxu0 0
    %684 = vmatpush2.bf16.msra.mxu0 %v542
    %685 = vmatprep.subr.bf16.mxu0 0
    %686 = vmatpush2.bf16.msra.mxu0 %v541
    %687 = vmatprep.subr.bf16.mxu0 0
    %688 = vmatpush2.bf16.msra.mxu0 %v540
    %689 = vmatprep.subr.bf16.mxu0 0
    %690 = vmatpush2.bf16.msra.mxu0 %v539
    %691 = vmatprep.mubr.bf16.mxu0 %v244
    %692 = vmatmul.mubr.bf16.gmra.mxu0 %v243
    %v693 = vpop.f32.mrf.mxu0
    %v694 = vadd.f32 %v193, %v693
    %v695 = vpop.f32.mrf.mxu0
    %v696 = vpop.f32.mrf.mxu0
    %v697 = vadd.f32 %v193, %v696
    %v698 = vpop.f32.mrf.mxu0
    %699 = vmatprep.mubr.bf16.mxu0 %v252
    %700 = vmatmul.mubr.bf16.gmra.mxu0 %v251
    %v701 = vpop.f32.mrf.mxu0
    %v702 = vadd.f32 %v193, %v701
    %v703 = vpop.f32.mrf.mxu0
    %v704 = vpop.f32.mrf.mxu0
    %v705 = vadd.f32 %v193, %v704
    %v706 = vpop.f32.mrf.mxu0
    %707 = vdwg.mxu0
    %708 = vmatprep.subr.bf16.mxu0 0
    %709 = vmatpush1.bf16.msra.mxu0 %v554
    %710 = vmatprep.subr.bf16.mxu0 0
    %711 = vmatpush1.bf16.msra.mxu0 %v553
    %712 = vmatprep.subr.bf16.mxu0 0
    %713 = vmatpush1.bf16.msra.mxu0 %v552
    %714 = vmatprep.subr.bf16.mxu0 0
    %715 = vmatpush1.bf16.msra.mxu0 %v551
    %716 = vmatprep.subr.bf16.mxu0 0
    %717 = vmatpush1.bf16.msra.mxu0 %v550
    %718 = vmatprep.subr.bf16.mxu0 0
    %719 = vmatpush1.bf16.msra.mxu0 %v549
    %720 = vmatprep.subr.bf16.mxu0 0
    %721 = vmatpush1.bf16.msra.mxu0 %v548
    %722 = vmatprep.subr.bf16.mxu0 0
    %723 = vmatpush1.bf16.msra.mxu0 %v547
    %724 = vmatprep.subr.bf16.mxu0 0
    %725 = vmatpush2.bf16.msra.mxu0 %v562
    %726 = vmatprep.subr.bf16.mxu0 0
    %727 = vmatpush2.bf16.msra.mxu0 %v561
    %728 = vmatprep.subr.bf16.mxu0 0
    %729 = vmatpush2.bf16.msra.mxu0 %v560
    %730 = vmatprep.subr.bf16.mxu0 0
    %731 = vmatpush2.bf16.msra.mxu0 %v559
    %732 = vmatprep.subr.bf16.mxu0 0
    %733 = vmatpush2.bf16.msra.mxu0 %v558
    %734 = vmatprep.subr.bf16.mxu0 0
    %735 = vmatpush2.bf16.msra.mxu0 %v557
    %736 = vmatprep.subr.bf16.mxu0 0
    %737 = vmatpush2.bf16.msra.mxu0 %v556
    %738 = vmatprep.subr.bf16.mxu0 0
    %739 = vmatpush2.bf16.msra.mxu0 %v555
    %740 = vmatprep.mubr.bf16.mxu0 %v246
    %741 = vmatmul.mubr.bf16.gmra.mxu0 %v245
    %v742 = vpop.f32.mrf.mxu0
    %v743 = vadd.f32 %v694, %v742
    %v744 = vpop.f32.mrf.mxu0
    %v745 = vpop.f32.mrf.mxu0
    %v746 = vadd.f32 %v697, %v745
    %v747 = vpop.f32.mrf.mxu0
    %748 = vmatprep.mubr.bf16.mxu0 %v254
    %749 = vmatmul.mubr.bf16.gmra.mxu0 %v253
    %v750 = vpop.f32.mrf.mxu0
    %v751 = vadd.f32 %v702, %v750
    %v752 = vpop.f32.mrf.mxu0
    %v753 = vpop.f32.mrf.mxu0
    %v754 = vadd.f32 %v705, %v753
    %v755 = vpop.f32.mrf.mxu0
    %756 = vdwg.mxu0
    %757 = vmatprep.subr.bf16.mxu0 0
    %758 = vmatpush1.bf16.msra.mxu0 %v570
    %759 = vmatprep.subr.bf16.mxu0 0
    %760 = vmatpush1.bf16.msra.mxu0 %v569
    %761 = vmatprep.subr.bf16.mxu0 0
    %762 = vmatpush1.bf16.msra.mxu0 %v568
    %763 = vmatprep.subr.bf16.mxu0 0
    %764 = vmatpush1.bf16.msra.mxu0 %v567
    %765 = vmatprep.subr.bf16.mxu0 0
    %766 = vmatpush1.bf16.msra.mxu0 %v566
    %767 = vmatprep.subr.bf16.mxu0 0
    %768 = vmatpush1.bf16.msra.mxu0 %v565
    %769 = vmatprep.subr.bf16.mxu0 0
    %770 = vmatpush1.bf16.msra.mxu0 %v564
    %771 = vmatprep.subr.bf16.mxu0 0
    %772 = vmatpush1.bf16.msra.mxu0 %v563
    %773 = vmatprep.subr.bf16.mxu0 0
    %774 = vmatpush2.bf16.msra.mxu0 %v578
    %775 = vmatprep.subr.bf16.mxu0 0
    %776 = vmatpush2.bf16.msra.mxu0 %v577
    %777 = vmatprep.subr.bf16.mxu0 0
    %778 = vmatpush2.bf16.msra.mxu0 %v576
    %779 = vmatprep.subr.bf16.mxu0 0
    %780 = vmatpush2.bf16.msra.mxu0 %v575
    %781 = vmatprep.subr.bf16.mxu0 0
    %782 = vmatpush2.bf16.msra.mxu0 %v574
    %783 = vmatprep.subr.bf16.mxu0 0
    %784 = vmatpush2.bf16.msra.mxu0 %v573
    %785 = vmatprep.subr.bf16.mxu0 0
    %786 = vmatpush2.bf16.msra.mxu0 %v572
    %787 = vmatprep.subr.bf16.mxu0 0
    %788 = vmatpush2.bf16.msra.mxu0 %v571
    %789 = vmatprep.mubr.bf16.mxu0 %v248
    %790 = vmatmul.mubr.bf16.gmra.mxu0 %v247
    %v791 = vpop.f32.mrf.mxu0
    %v792 = vadd.f32 %v743, %v791
    %v793 = vpop.f32.mrf.mxu0
    %v794 = vpop.f32.mrf.mxu0
    %v795 = vadd.f32 %v746, %v794
    %v796 = vpop.f32.mrf.mxu0
    %797 = vmatprep.mubr.bf16.mxu0 %v256
    %798 = vmatmul.mubr.bf16.gmra.mxu0 %v255
    %v799 = vpop.f32.mrf.mxu0
    %v800 = vadd.f32 %v751, %v799
    %v801 = vpop.f32.mrf.mxu0
    %v802 = vpop.f32.mrf.mxu0
    %v803 = vadd.f32 %v754, %v802
    %v804 = vpop.f32.mrf.mxu0
    %805 = vdwg.mxu0
    %806 = vmatprep.subr.bf16.mxu0 0
    %807 = vmatpush1.bf16.msra.mxu0 %v586
    %808 = vmatprep.subr.bf16.mxu0 0
    %809 = vmatpush1.bf16.msra.mxu0 %v585
    %810 = vmatprep.subr.bf16.mxu0 0
    %811 = vmatpush1.bf16.msra.mxu0 %v584
    %812 = vmatprep.subr.bf16.mxu0 0
    %813 = vmatpush1.bf16.msra.mxu0 %v583
    %814 = vmatprep.subr.bf16.mxu0 0
    %815 = vmatpush1.bf16.msra.mxu0 %v582
    %816 = vmatprep.subr.bf16.mxu0 0
    %817 = vmatpush1.bf16.msra.mxu0 %v581
    %818 = vmatprep.subr.bf16.mxu0 0
    %819 = vmatpush1.bf16.msra.mxu0 %v580
    %820 = vmatprep.subr.bf16.mxu0 0
    %821 = vmatpush1.bf16.msra.mxu0 %v579
    %822 = vmatprep.subr.bf16.mxu0 0
    %823 = vmatpush2.bf16.msra.mxu0 %v594
    %824 = vmatprep.subr.bf16.mxu0 0
    %825 = vmatpush2.bf16.msra.mxu0 %v593
    %826 = vmatprep.subr.bf16.mxu0 0
    %827 = vmatpush2.bf16.msra.mxu0 %v592
    %828 = vmatprep.subr.bf16.mxu0 0
    %829 = vmatpush2.bf16.msra.mxu0 %v591
    %830 = vmatprep.subr.bf16.mxu0 0
    %831 = vmatpush2.bf16.msra.mxu0 %v590
    %832 = vmatprep.subr.bf16.mxu0 0
    %833 = vmatpush2.bf16.msra.mxu0 %v589
    %834 = vmatprep.subr.bf16.mxu0 0
    %835 = vmatpush2.bf16.msra.mxu0 %v588
    %836 = vmatprep.subr.bf16.mxu0 0
    %837 = vmatpush2.bf16.msra.mxu0 %v587
    %838 = vmatprep.mubr.bf16.mxu0 %v250
    %839 = vmatmul.mubr.bf16.gmra.mxu0 %v249
    %v840 = vpop.f32.mrf.mxu0
    %v841 = vadd.f32 %v792, %v840
    %v842 = vpop.f32.mrf.mxu0
    %v843 = vpop.f32.mrf.mxu0
    %v844 = vadd.f32 %v795, %v843
    %v845 = vpop.f32.mrf.mxu0
    %846 = vmatprep.mubr.bf16.mxu0 %v258
    %847 = vmatmul.mubr.bf16.gmra.mxu0 %v257
    %v848 = vpop.f32.mrf.mxu0
    %v849 = vadd.f32 %v800, %v848
    %v850 = vpop.f32.mrf.mxu0
    %v851 = vpop.f32.mrf.mxu0
    %v852 = vadd.f32 %v803, %v851
    %v853 = vpop.f32.mrf.mxu0
    %854 = vdwg.mxu0
    %v855 = vmax.f32 %v841, 0.0
    %v856 = vmax.f32 %v844, 0.0
    %v857 = vmax.f32 %v849, 0.0
    %v858 = vmax.f32 %v852, 0.0
    %v859 = vpack.c.bf16 %v856, %v855
    %v860 = vpack.c.bf16 %v858, %v857
    %v863 = vunpack.c.l.b16 %v859
    %v864 = vunpack.c.h.b16 %v859
    %v865 = vunpack.c.l.b16 %v860
    %v866 = vunpack.c.h.b16 %v860
    %v867 = vpack.c.b16 %v863, %v863
    %v868 = vpack.c.b16 %v864, %v864
    %v869 = vpack.c.b16 %v865, %v865
    %v870 = vpack.c.b16 %v866, %v866
    %875 = vst [vmem:[#allocation7] sm:$0xf] %v867
    %876 = vst [vmem:[#allocation7 + $0x4] sm:$0xf] %v868
    %877 = vst [vmem:[#allocation7 + $0x8] sm:$0xf] %v869
    %878 = vst [vmem:[#allocation7 + $0xc] sm:$0xf] %v870
    // Predicated region
    $region22: #{tpu_custom_call.1} parent=1 // pred_check
      _
    $region23: #{tpu_custom_call.1} parent=1 // pred_check_branch
      %880 = sbr.rel (0) target = $region25
    $region24: #{tpu_custom_call.1} parent=1 // pred_region
      %s882 = ssub.s32 256, 256
      %883 = vsyncadd [#allocation4], %s882
      %s884 = sshll.u32 [#allocation7], 4
      %s885 = int_to_ptr.vmem [resolvable:$true] %s884
      %890 = dma.vmem_to_hbm [thread:$0]  %s885, 256, %s3, [#allocation4], 64, 64, 4
    $region25: #{tpu_custom_call.1} parent=1 // pred_fallthru
      _
    // Predicated region
    $region26: #{tpu_custom_call.1} parent=1 // pred_check
      _
    $region27: #{tpu_custom_call.1} parent=1 // pred_check_branch
      %892 = sbr.rel (0) target = $region29
    $region28: #{tpu_custom_call.1} parent=1 // pred_region
      %893 = dma.done [#allocation4], 256
    $region29: #{tpu_custom_call.1} parent=1 // pred_fallthru
      _
    %894 = vsyncpa [#allocation3], 1
    %895 = vsyncpa [#allocation6], 1
    %896 = vsyncpa [#allocation4], 1

</llo_original>
